<compile_context>
chip_gen: v6e
topology: v6e:2x2x1
jax: 0.10.0
libtpu: 0.0.40
codegen_flags: <defaults>
</compile_context>

<pallas_src>
import functools

import jax
import jax.numpy as jnp
from jax.experimental import pallas as pl
from jax.experimental.pallas import tpu as pltpu

HIDDEN = 768        # wav2vec2-base hidden size (fixed by nn.Linear(768, 128))
DENSE = 128         # MOS head inner width (fixed by nn.Linear(768, 128))
MAX_T_TILE = 2048   # time-tile rows (6 MiB f32/buffer) -- VMEM-safe on v7x
SMALL_T_MAX = 512   # below this (and T % 8 == 0) fold batch into the M dim
PATH_A_ROWS = 2048  # target rows (b_tile * T) per block on the small-T path


def _largest_divisor_leq(n, cap):
    for d in range(min(n, cap), 0, -1):
        if n % d == 0:
            return d
    return 1


# ---------------------------------------------------------------------------
# Path A: small T -- fold batch into the matmul M dimension.
# ---------------------------------------------------------------------------
def _mos_head_batched_kernel(x_ref, w1_ref, b1_ref, w2_ref, b2_ref, o_ref,
                             *, t_total):
    """Grid = (B // b_tile,).

    x_ref : (b_tile, T, 768)  native dtype
    o_ref : (b_tile, 1)       f32 MOS scores
    """
    b_tile = x_ref.shape[0]
    # In-kernel VPU cast (no extra HBM pass); T % 8 == 0 so reshapes are free.
    x = x_ref[...].astype(jnp.bfloat16).reshape(b_tile * t_total, HIDDEN)
    w1 = w1_ref[...].astype(jnp.bfloat16)
    h = jnp.dot(x, w1, preferred_element_type=jnp.float32)
    h = jnp.maximum(h + b1_ref[...], 0.0)                  # (b_tile*T, 128)
    h = h.reshape(b_tile, t_total, DENSE)
    mean_h = jnp.sum(h, axis=1) * (1.0 / t_total)          # (b_tile, 128)
    mos = jnp.sum(mean_h * w2_ref[...], axis=-1, keepdims=True) + b2_ref[0]
    o_ref[...] = mos.astype(o_ref.dtype)


def _mos_head_small_t(x, w1, b1_f, w2_row, b2_s):
    B, T, _ = x.shape
    cap = max(1, PATH_A_ROWS // max(T, 1))
    b_tile = _largest_divisor_leq(B, cap)     # divisor of B -> no ragged batch
    grid = (B // b_tile,)

    cost = pl.CostEstimate(
        flops=2 * B * T * HIDDEN * DENSE + 2 * B * T * DENSE,
        transcendentals=0,
        bytes_accessed=int(x.size * x.dtype.itemsize
                           + w1.size * w1.dtype.itemsize
                           + (2 * DENSE + 1 + B) * 4))

    kernel = functools.partial(_mos_head_batched_kernel, t_total=T)
    return pl.pallas_call(
        kernel,
        out_shape=jax.ShapeDtypeStruct((B, 1), jnp.float32),
        grid=grid,
        in_specs=[
            pl.BlockSpec((b_tile, T, HIDDEN), lambda i: (i, 0, 0)),
            pl.BlockSpec((HIDDEN, DENSE), lambda i: (0, 0)),
            pl.BlockSpec((1, DENSE), lambda i: (0, 0)),
            pl.BlockSpec((1, DENSE), lambda i: (0, 0)),
            pl.BlockSpec(memory_space=pltpu.MemorySpace.SMEM),
        ],
        out_specs=pl.BlockSpec((b_tile, 1), lambda i: (i, 0)),
        compiler_params=pltpu.CompilerParams(
            dimension_semantics=("parallel",),
            vmem_limit_bytes=32 * 1024 * 1024),
        cost_estimate=cost,
    )(x, w1, b1_f, w2_row, b2_s)


# ---------------------------------------------------------------------------
# Path B: long clips -- time-tiled reduction (+ optional 2-way core split).
# ---------------------------------------------------------------------------
def _mos_head_tiled_kernel(x_ref, w1_ref, b1_ref, w2_ref, b2_ref, o_ref,
                           acc_ref, *, t_total, t_tile, n_t_ps, n_split,
                           needs_mask):
    """Grid = (B, n_split, n_t_ps); time axis is the innermost reduction.

    x_ref : (1, t_tile, 768)  native dtype     one time-tile of one clip
    o_ref : (1, 1, 1)         f32              partial MOS for (clip, split)
    acc_ref: (8, 128)         f32 scratch      VPU-friendly partial sums
    """
    t = pl.program_id(2)

    @pl.when(t == 0)
    def _():
        acc_ref[...] = jnp.zeros_like(acc_ref)

    # Cast per tile on the VPU right before the MXU dot (hidden under DMA).
    x = x_ref[0].astype(jnp.bfloat16)
    w1 = w1_ref[...].astype(jnp.bfloat16)
    h = jnp.dot(x, w1, preferred_element_type=jnp.float32)
    h = jnp.maximum(h + b1_ref[...], 0.0)                  # (t_tile, 128)

    def _accumulate(hv):
        if t_tile % 8 == 0:
            # (8,128) accumulator, pure VPU adds; XLU reduce deferred to epilogue.
            acc_ref[...] += jnp.sum(hv.reshape(t_tile // 8, 8, DENSE), axis=0)
        else:
            # Only hit when t_tile == T (single tile, no mask): one XLU reduce.
            acc_ref[0:1, :] += jnp.sum(hv, axis=0, keepdims=True)

    if needs_mask:
        gt = pl.program_id(1) * n_t_ps + t                 # global tile index
        tile_start = gt * t_tile

        @pl.when(tile_start + t_tile <= t_total)           # full tiles: no mask
        def _():
            _accumulate(h)

        @pl.when(tile_start + t_tile > t_total)            # partial / phantom tile
        def _():
            row = jax.lax.broadcasted_iota(jnp.int32, (t_tile, 1), 0) + tile_start
            _accumulate(jnp.where(row < t_total, h, 0.0))
    else:
        _accumulate(h)

    @pl.when(t == pl.num_programs(2) - 1)
    def _():
        total = jnp.sum(acc_ref[...], axis=0, keepdims=True)          # (1,128)
        mos = jnp.sum(total * w2_ref[...], axis=-1, keepdims=True) * (1.0 / t_total)
        mos = mos + b2_ref[0] * (1.0 / n_split)
        o_ref[...] = mos.reshape(1, 1, 1).astype(o_ref.dtype)


def _mos_head_tiled(x, w1, b1_f, w2_row, b2_s, max_t_tile):
    B, T, _ = x.shape
    t_tile = T if T <= max_t_tile else max(8, (max_t_tile // 8) * 8)
    n_t = pl.cdiv(T, t_tile)
    # Split the T reduction across 2 "parallel" shards when B == 1 so both
    # v7x TensorCores stay busy (negligible overhead on 1-TC chips).
    n_split = 2 if (B == 1 and n_t >= 2) else 1
    n_t_ps = pl.cdiv(n_t, n_split)
    needs_mask = (n_split * n_t_ps * t_tile) != T

    def x_map(b, c, t):
        # Clamp phantom tiles (odd n_t with n_split=2) to a valid block; the
        # in-kernel mask zeroes their contribution.
        return (b, jnp.minimum(c * n_t_ps + t, n_t - 1), 0)

    kernel = functools.partial(
        _mos_head_tiled_kernel, t_total=T, t_tile=t_tile, n_t_ps=n_t_ps,
        n_split=n_split, needs_mask=needs_mask)

    cost = pl.CostEstimate(
        flops=2 * B * T * HIDDEN * DENSE + 2 * B * T * DENSE,
        transcendentals=0,
        bytes_accessed=int(x.size * x.dtype.itemsize
                           + w1.size * w1.dtype.itemsize
                           + (2 * DENSE + 1 + B * n_split) * 4))

    partial_mos = pl.pallas_call(
        kernel,
        out_shape=jax.ShapeDtypeStruct((B, n_split, 1), jnp.float32),
        grid=(B, n_split, n_t_ps),
        in_specs=[
            pl.BlockSpec((1, t_tile, HIDDEN), x_map),
            pl.BlockSpec((HIDDEN, DENSE), lambda b, c, t: (0, 0)),
            pl.BlockSpec((1, DENSE), lambda b, c, t: (0, 0)),
            pl.BlockSpec((1, DENSE), lambda b, c, t: (0, 0)),
            pl.BlockSpec(memory_space=pltpu.MemorySpace.SMEM),
        ],
        out_specs=pl.BlockSpec((1, 1, 1), lambda b, c, t: (b, c, 0)),
        scratch_shapes=[pltpu.VMEM((8, DENSE), jnp.float32)],
        compiler_params=pltpu.CompilerParams(
            dimension_semantics=("parallel", "parallel", "arbitrary"),
            vmem_limit_bytes=32 * 1024 * 1024),
        cost_estimate=cost,
    )(x, w1, b1_f, w2_row, b2_s)

    return jnp.sum(partial_mos, axis=1)                    # (B, 1)


# ---------------------------------------------------------------------------
# Public wrapper
# ---------------------------------------------------------------------------
def wav2vec2_mos_head(hidden_states, w1, b1, w2, b2, *, max_t_tile=MAX_T_TILE):
    """hidden_states: (B, T, 768) -> (B, 1) f32 MOS scores."""
    B, T, C = hidden_states.shape
    assert C == HIDDEN
    # Parameters stay f32 (tiny, DMA'd once); MXU operands cast in-kernel.
    w1_f = jnp.asarray(w1, jnp.float32).reshape(HIDDEN, DENSE)
    b1_f = jnp.asarray(b1, jnp.float32).reshape(1, DENSE)
    w2_row = jnp.asarray(w2, jnp.float32).reshape(1, DENSE)   # (128,1) -> row
    b2_s = jnp.asarray(b2, jnp.float32).reshape(1)            # SMEM scalar

    if T <= SMALL_T_MAX and T % 8 == 0:
        return _mos_head_small_t(hidden_states, w1_f, b1_f, w2_row, b2_s)
    return _mos_head_tiled(hidden_states, w1_f, b1_f, w2_row, b2_s, max_t_tile)


def init_params(key):
    """Deterministic synthetic init matching nn.Linear default shapes."""
    k1, k2, k3, k4 = jax.random.split(key, 4)
    lim1 = 1.0 / jnp.sqrt(HIDDEN)
    lim2 = 1.0 / jnp.sqrt(DENSE)
    w1 = jax.random.uniform(k1, (HIDDEN, DENSE), jnp.float32, -lim1, lim1)
    b1 = jax.random.uniform(k2, (1, DENSE), jnp.float32, -lim1, lim1)
    w2 = jax.random.uniform(k3, (DENSE, 1), jnp.float32, -lim2, lim2)
    b2 = jax.random.uniform(k4, (1, 1), jnp.float32, -lim2, lim2)
    return w1, b1, w2, b2


def _reference(hidden_states, w1, b1, w2, b2):
    """Plain-JAX reference with the same bf16-matmul / f32-accum numerics."""
    x_bf = hidden_states.astype(jnp.bfloat16)
    w1_bf = w1.astype(jnp.bfloat16)
    h = jnp.einsum('btc,cd->btd', x_bf, w1_bf,
                   preferred_element_type=jnp.float32)
    h = jnp.maximum(h + b1.reshape(1, 1, DENSE), 0.0)          # (B, T, 128)
    y = h @ w2 + b2.reshape(1, 1, 1)                           # (B, T, 1)
    return jnp.mean(y, axis=1)                                 # (B, 1)


if __name__ == "__main__":
    key = jax.random.PRNGKey(0)
    k1, k2, k3, k4, kp = jax.random.split(key, 5)
    w1, b1, w2, b2 = init_params(kp)

    # Case 1: small-T path (batch folded into the matmul M dim).
    B, T = 2, 8
    hs = jax.random.normal(k1, (B, T, HIDDEN), jnp.float32)
    out = jax.block_until_ready(wav2vec2_mos_head(hs, w1, b1, w2, b2))
    ref = _reference(hs, w1, b1, w2, b2)
    assert out.shape == (B, 1)
    assert jnp.allclose(out, ref, atol=2e-3, rtol=2e-3)

    # Case 2: time-tiled path with a partial trailing tile (T % t_tile != 0).
    B2, T2 = 2, 600
    hs2 = jax.random.normal(k2, (B2, T2, HIDDEN), jnp.float32)
    out2 = jax.block_until_ready(
        wav2vec2_mos_head(hs2, w1, b1, w2, b2, max_t_tile=256))
    ref2 = _reference(hs2, w1, b1, w2, b2)
    assert out2.shape == (B2, 1)
    assert jnp.allclose(out2, ref2, atol=2e-3, rtol=2e-3)

    # Case 3: B == 1 -> T reduction split into 2 "parallel" shards (v7x
    # megacore path); odd tile count exercises the fully-masked phantom tile.
    B3, T3 = 1, 600
    hs3 = jax.random.normal(k3, (B3, T3, HIDDEN), jnp.float32)
    out3 = jax.block_until_ready(
        wav2vec2_mos_head(hs3, w1, b1, w2, b2, max_t_tile=256))
    ref3 = _reference(hs3, w1, b1, w2, b2)
    assert out3.shape == (B3, 1)
    assert jnp.allclose(out3, ref3, atol=2e-3, rtol=2e-3)

    # Case 4: T not a multiple of 8 -> full-T tile, non-(8,128) accumulate path.
    B4, T4 = 3, 13
    hs4 = jax.random.normal(k4, (B4, T4, HIDDEN), jnp.float32)
    out4 = jax.block_until_ready(wav2vec2_mos_head(hs4, w1, b1, w2, b2))
    ref4 = _reference(hs4, w1, b1, w2, b2)
    assert out4.shape == (B4, 1)
    assert jnp.allclose(out4, ref4, atol=2e-3, rtol=2e-3)

    print("KERNEL_OK")
</pallas_src>

<mosaic_0001>
module attributes {stable_mosaic.version = 11 : i64} {
  func.func @_mos_head_batched_kernel(%arg0: i32, %arg1: memref<2x8x768xf32, #tpu.memory_space<vmem>>, %arg2: memref<768x128xf32, #tpu.memory_space<vmem>>, %arg3: memref<1x128xf32, #tpu.memory_space<vmem>>, %arg4: memref<1x128xf32, #tpu.memory_space<vmem>>, %arg5: memref<1xf32, #tpu.memory_space<smem>>, %arg6: memref<2x1xf32, #tpu.memory_space<vmem>>) attributes {dimension_semantics = [#tpu.dimension_semantics<parallel>], iteration_bounds = array<i64: 1>, scalar_prefetch = 0 : i64, scratch_operands = 0 : i64, tpu.core_type = #tpu.core_type<tc>, window_params = [{transform_indices = @transform_0, window_bounds = array<i64: 2, 8, 768>}, {pipeline_mode = #tpu.pipeline_mode<synchronous>, transform_indices = @transform_1, window_bounds = array<i64: 768, 128>}, {pipeline_mode = #tpu.pipeline_mode<synchronous>, transform_indices = @transform_2, window_bounds = array<i64: 1, 128>}, {pipeline_mode = #tpu.pipeline_mode<synchronous>, transform_indices = @transform_3, window_bounds = array<i64: 1, 128>}, {transform_indices = @transform_4, window_bounds = array<i64: 1>}, {transform_indices = @transform_5, window_bounds = array<i64: 2, 1>}]} {
    %c0 = arith.constant 0 : index
    %c0_0 = arith.constant 0 : index
    %c0_1 = arith.constant 0 : index
    %0 = vector.load %arg1[%c0, %c0_0, %c0_1] : memref<2x8x768xf32, #tpu.memory_space<vmem>>, vector<2x8x768xf32>
    %1 = arith.truncf %0 : vector<2x8x768xf32> to vector<2x8x768xbf16>
    %2 = vector.shape_cast %1 : vector<2x8x768xbf16> to vector<16x768xbf16>
    %c0_2 = arith.constant 0 : index
    %c0_3 = arith.constant 0 : index
    %3 = vector.load %arg2[%c0_2, %c0_3] : memref<768x128xf32, #tpu.memory_space<vmem>>, vector<768x128xf32>
    %4 = arith.truncf %3 : vector<768x128xf32> to vector<768x128xbf16>
    %cst = arith.constant dense<0.000000e+00> : vector<16x128xf32>
    %5 = tpu.matmul %2, %4, %cst {dimension_numbers = #tpu.dot_dimension_numbers<[1], [0], [0], [1], [0, 0, 1, 1], [], []>} : vector<16x768xbf16>, vector<768x128xbf16>, vector<16x128xf32> -> vector<16x128xf32>
    %c0_4 = arith.constant 0 : index
    %c0_5 = arith.constant 0 : index
    %6 = vector.load %arg3[%c0_4, %c0_5] : memref<1x128xf32, #tpu.memory_space<vmem>>, vector<1x128xf32>
    %7 = vector.broadcast %6 : vector<1x128xf32> to vector<16x128xf32>
    %8 = arith.addf %5, %7 : vector<16x128xf32>
    %cst_6 = arith.constant 0.000000e+00 : f32
    %9 = vector.broadcast %cst_6 : f32 to vector<16x128xf32>
    %10 = arith.maximumf %8, %9 : vector<16x128xf32>
    %11 = vector.shape_cast %10 : vector<16x128xf32> to vector<2x8x128xf32>
    %cst_7 = arith.constant dense<0.000000e+00> : vector<2x128xf32>
    %12 = vector.multi_reduction <add>, %11, %cst_7 [1] : vector<2x8x128xf32> to vector<2x128xf32>
    %cst_8 = arith.constant 1.250000e-01 : f32
    %13 = vector.broadcast %cst_8 : f32 to vector<2x128xf32>
    %14 = arith.mulf %12, %13 : vector<2x128xf32>
    %c0_9 = arith.constant 0 : index
    %c0_10 = arith.constant 0 : index
    %15 = vector.load %arg4[%c0_9, %c0_10] : memref<1x128xf32, #tpu.memory_space<vmem>>, vector<1x128xf32>
    %16 = vector.broadcast %15 : vector<1x128xf32> to vector<2x128xf32>
    %17 = arith.mulf %14, %16 : vector<2x128xf32>
    %cst_11 = arith.constant dense<0.000000e+00> : vector<2xf32>
    %18 = vector.multi_reduction <add>, %17, %cst_11 [1] : vector<2x128xf32> to vector<2xf32>
    %19 = vector.shape_cast %18 : vector<2xf32> to vector<2x1xf32>
    %c0_12 = arith.constant 0 : index
    %20 = memref.load %arg5[%c0_12] : memref<1xf32, #tpu.memory_space<smem>>
    %21 = vector.broadcast %20 : f32 to vector<2x1xf32>
    %22 = arith.addf %19, %21 : vector<2x1xf32>
    %c0_13 = arith.constant 0 : index
    %c0_14 = arith.constant 0 : index
    %23 = vector.load %arg6[%c0_13, %c0_14] : memref<2x1xf32, #tpu.memory_space<vmem>>, vector<2x1xf32>
    tpu.vector_store %arg6[%c0_13, %c0_14], %22 {strides = array<i32>} : memref<2x1xf32, #tpu.memory_space<vmem>>, vector<2x1xf32>,
    return
  }
  func.func @transform_0(%arg0: i32) -> (i32, i32, i32) {
    %c0_i32 = arith.constant 0 : i32
    %c0_i32_0 = arith.constant 0 : i32
    %c0_i32_1 = arith.constant 0 : i32
    return %arg0, %c0_i32, %c0_i32_0 : i32, i32, i32
  }
  func.func @transform_1(%arg0: i32) -> (i32, i32) {
    %c0_i32 = arith.constant 0 : i32
    %c0_i32_0 = arith.constant 0 : i32
    %c0_i32_1 = arith.constant 0 : i32
    return %c0_i32, %c0_i32_0 : i32, i32
  }
  func.func @transform_2(%arg0: i32) -> (i32, i32) {
    %c0_i32 = arith.constant 0 : i32
    %c0_i32_0 = arith.constant 0 : i32
    %c0_i32_1 = arith.constant 0 : i32
    return %c0_i32, %c0_i32_0 : i32, i32
  }
  func.func @transform_3(%arg0: i32) -> (i32, i32) {
    %c0_i32 = arith.constant 0 : i32
    %c0_i32_0 = arith.constant 0 : i32
    %c0_i32_1 = arith.constant 0 : i32
    return %c0_i32, %c0_i32_0 : i32, i32
  }
  func.func @transform_4(%arg0: i32) -> i32 {
    %c0_i32 = arith.constant 0 : i32
    %c0_i32_0 = arith.constant 0 : i32
    return %c0_i32 : i32
  }
  func.func @transform_5(%arg0: i32) -> (i32, i32) {
    %c0_i32 = arith.constant 0 : i32
    %c0_i32_0 = arith.constant 0 : i32
    return %arg0, %c0_i32 : i32, i32
  }
}

</mosaic_0001>

<llo_original>
// kernel: tpu_custom_call.1
$region0: #{tpu_custom_call.1}
  #allocation0 [shape = 'u32[]', space=smem, size = 0x4, offset = 0x4, fixed_abs, tag = 'smem constant byte address 0x4 - core index']
  #allocation1 [shape = 'u32[144,128]{1,0:T(1,128)}', space=vmem, size = 0x12000, scoped, tag = 'internal scratch']
  #allocation2 [shape = 'f32[1]{0:T(128)S(6)}', space=smem, size = 0x200, scoped, tag = 'scoped memory for tpu_custom_call.1']
  %s0 = inlined_call_operand.hbm [shape: f32[2,8,768], index: 0, kind: input, shape index: {}]
  %s1 = inlined_call_operand.hbm [shape: f32[768,128], index: 1, kind: input, shape index: {}]
  %s2 = inlined_call_operand.vmem [shape: f32[1,128], index: 2, kind: input, shape index: {}]
  %s3 = inlined_call_operand.vmem [shape: f32[1,128], index: 3, kind: input, shape index: {}]
  %s4 = inlined_call_operand.<no memory space> [shape: f32[1], index: 4, kind: input, shape index: {}]
  %s5 = inlined_call_operand.vmem [shape: f32[2,1], index: 5, kind: output, shape index: {}]
  %s6 = sld [smem:[#allocation0]]
  $region38: #{tpu_custom_call.1} parent=0
    _
  %s8 = ssub.s32 1, %s6
  %s9 = scalar_select 0, %s8, %s6
  %10 = sst [smem:[#allocation2]] %s4
  $region1: #{tpu_custom_call.1} parent=0
    #allocation3 [shape = 'u8[49152]{0}', space=vmem, size = 0xc000, scoped, tag = 'input window, operand 0, single buffered']
    #allocation4 [shape = 's32[1]{0}', space=sflag, size = 0x4, scoped, tag = 'scoped memory for tpu_custom_call.1']
    #allocation5 [shape = 'u8[393216]{0}', space=vmem, size = 0x60000, scoped, tag = 'input window, operand 1, single buffered']
    #allocation6 [shape = 's32[1]{0}', space=sflag, size = 0x4, scoped, tag = 'scoped memory for tpu_custom_call.1']
    %11 = vsyncpa [#allocation4], 0
    %12 = vsyncpa [#allocation6], 0
    // Predicated region
    $region2: #{tpu_custom_call.1} parent=1 // pred_check
      _
    $region3: #{tpu_custom_call.1} parent=1 // pred_check_branch
      %14 = sbr.rel (0) target = $region5
    $region4: #{tpu_custom_call.1} parent=1 // pred_region
      %s16 = ssub.s32 1536, 1536
      %17 = vsyncadd [#allocation4], %s16
      %s18 = sshll.u32 [#allocation3], 4
      %s19 = int_to_ptr.vmem [resolvable:$true] %s18
      %24 = dma.hbm_to_vmem [thread:$0]  %s0, 1536, %s19, [#allocation4], 768, 768, 48
    $region5: #{tpu_custom_call.1} parent=1 // pred_fallthru
      _
    // Predicated region
    $region6: #{tpu_custom_call.1} parent=1 // pred_check
      _
    $region7: #{tpu_custom_call.1} parent=1 // pred_check_branch
      %26 = sbr.rel (0) target = $region9
    $region8: #{tpu_custom_call.1} parent=1 // pred_region
      %s28 = ssub.s32 12288, 12288
      %29 = vsyncadd [#allocation6], %s28
      %s30 = sshll.u32 [#allocation5], 4
      %s31 = int_to_ptr.vmem [resolvable:$true] %s30
      %36 = dma.hbm_to_vmem [thread:$0]  %s1, 12288, %s31, [#allocation6], 128, 128, 8
    $region9: #{tpu_custom_call.1} parent=1 // pred_fallthru
      _
    // Predicated region
    $region10: #{tpu_custom_call.1} parent=1 // pred_check
      _
    $region11: #{tpu_custom_call.1} parent=1 // pred_check_branch
      %38 = sbr.rel (0) target = $region13
    $region12: #{tpu_custom_call.1} parent=1 // pred_region
      _
    $region13: #{tpu_custom_call.1} parent=1 // pred_fallthru
      _
    // Predicated region
    $region14: #{tpu_custom_call.1} parent=1 // pred_check
      _
    $region15: #{tpu_custom_call.1} parent=1 // pred_check_branch
      %40 = sbr.rel (0) target = $region17
    $region16: #{tpu_custom_call.1} parent=1 // pred_region
      _
    $region17: #{tpu_custom_call.1} parent=1 // pred_fallthru
      _
    // Predicated region
    $region18: #{tpu_custom_call.1} parent=1 // pred_check
      _
    $region19: #{tpu_custom_call.1} parent=1 // pred_check_branch
      %42 = sbr.rel (0) target = $region21
    $region20: #{tpu_custom_call.1} parent=1 // pred_region
      _
    $region21: #{tpu_custom_call.1} parent=1 // pred_fallthru
      _
    // Predicated region
    $region22: #{tpu_custom_call.1} parent=1 // pred_check
      _
    $region23: #{tpu_custom_call.1} parent=1 // pred_check_branch
      %44 = sbr.rel (0) target = $region25
    $region24: #{tpu_custom_call.1} parent=1 // pred_region
      %45 = dma.done [#allocation4], 1536
    $region25: #{tpu_custom_call.1} parent=1 // pred_fallthru
      _
    // Predicated region
    $region26: #{tpu_custom_call.1} parent=1 // pred_check
      _
    $region27: #{tpu_custom_call.1} parent=1 // pred_check_branch
      %47 = sbr.rel (0) target = $region29
    $region28: #{tpu_custom_call.1} parent=1 // pred_region
      %48 = dma.done [#allocation6], 12288
    $region29: #{tpu_custom_call.1} parent=1 // pred_fallthru
      _
    %v50 = vld [vmem:[#allocation3] sm:$0xff]
    %v51 = vld [vmem:[#allocation3 + $0x8] sm:$0xff]
    %v52 = vld [vmem:[#allocation3 + $0x10] sm:$0xff]
    %v53 = vld [vmem:[#allocation3 + $0x18] sm:$0xff]
    %v54 = vld [vmem:[#allocation3 + $0x20] sm:$0xff]
    %v55 = vld [vmem:[#allocation3 + $0x28] sm:$0xff]
    %v56 = vld [vmem:[#allocation3 + $0x30] sm:$0xff]
    %v57 = vld [vmem:[#allocation3 + $0x38] sm:$0xff]
    %v58 = vld [vmem:[#allocation3 + $0x40] sm:$0xff]
    %v59 = vld [vmem:[#allocation3 + $0x48] sm:$0xff]
    %v60 = vld [vmem:[#allocation3 + $0x50] sm:$0xff]
    %v61 = vld [vmem:[#allocation3 + $0x58] sm:$0xff]
    %v62 = vpack.c.bf16 %v50, %v50
    %v63 = vpack.c.bf16 %v51, %v51
    %v64 = vpack.c.bf16 %v52, %v52
    %v65 = vpack.c.bf16 %v53, %v53
    %v66 = vpack.c.bf16 %v54, %v54
    %v67 = vpack.c.bf16 %v55, %v55
    %v68 = vpack.c.bf16 %v56, %v56
    %v69 = vpack.c.bf16 %v57, %v57
    %v70 = vpack.c.bf16 %v58, %v58
    %v71 = vpack.c.bf16 %v59, %v59
    %v72 = vpack.c.bf16 %v60, %v60
    %v73 = vpack.c.bf16 %v61, %v61
    %v86 = vunpack.c.l.b16 %v62
    %v87 = vunpack.c.l.b16 %v63
    %v88 = vunpack.c.l.b16 %v64
    %v89 = vunpack.c.l.b16 %v65
    %v90 = vunpack.c.l.b16 %v66
    %v91 = vunpack.c.l.b16 %v67
    %v92 = vunpack.c.l.b16 %v68
    %v93 = vunpack.c.l.b16 %v69
    %v94 = vunpack.c.l.b16 %v70
    %v95 = vunpack.c.l.b16 %v71
    %v96 = vunpack.c.l.b16 %v72
    %v97 = vunpack.c.l.b16 %v73
    %v98 = vld [vmem:[#allocation5] sm:$0xff]
    %v99 = vld [vmem:[#allocation5 + $0x8] sm:$0xff]
    %v100 = vld [vmem:[#allocation5 + $0x10] sm:$0xff]
    %v101 = vld [vmem:[#allocation5 + $0x18] sm:$0xff]
    %v102 = vld [vmem:[#allocation5 + $0x20] sm:$0xff]
    %v103 = vld [vmem:[#allocation5 + $0x28] sm:$0xff]
    %v104 = vld [vmem:[#allocation5 + $0x30] sm:$0xff]
    %v105 = vld [vmem:[#allocation5 + $0x38] sm:$0xff]
    %v106 = vld [vmem:[#allocation5 + $0x40] sm:$0xff]
    %v107 = vld [vmem:[#allocation5 + $0x48] sm:$0xff]
    %v108 = vld [vmem:[#allocation5 + $0x50] sm:$0xff]
    %v109 = vld [vmem:[#allocation5 + $0x58] sm:$0xff]
    %v110 = vld [vmem:[#allocation5 + $0x60] sm:$0xff]
    %v111 = vld [vmem:[#allocation5 + $0x68] sm:$0xff]
    %v112 = vld [vmem:[#allocation5 + $0x70] sm:$0xff]
    %v113 = vld [vmem:[#allocation5 + $0x78] sm:$0xff]
    %v114 = vld [vmem:[#allocation5 + $0x80] sm:$0xff]
    %v115 = vld [vmem:[#allocation5 + $0x88] sm:$0xff]
    %v116 = vld [vmem:[#allocation5 + $0x90] sm:$0xff]
    %v117 = vld [vmem:[#allocation5 + $0x98] sm:$0xff]
    %v118 = vld [vmem:[#allocation5 + $0xa0] sm:$0xff]
    %v119 = vld [vmem:[#allocation5 + $0xa8] sm:$0xff]
    %v120 = vld [vmem:[#allocation5 + $0xb0] sm:$0xff]
    %v121 = vld [vmem:[#allocation5 + $0xb8] sm:$0xff]
    %v122 = vld [vmem:[#allocation5 + $0xc0] sm:$0xff]
    %v123 = vld [vmem:[#allocation5 + $0xc8] sm:$0xff]
    %v124 = vld [vmem:[#allocation5 + $0xd0] sm:$0xff]
    %v125 = vld [vmem:[#allocation5 + $0xd8] sm:$0xff]
    %v126 = vld [vmem:[#allocation5 + $0xe0] sm:$0xff]
    %v127 = vld [vmem:[#allocation5 + $0xe8] sm:$0xff]
    %v128 = vld [vmem:[#allocation5 + $0xf0] sm:$0xff]
    %v129 = vld [vmem:[#allocation5 + $0xf8] sm:$0xff]
    %v130 = vld [vmem:[#allocation5 + $0x100] sm:$0xff]
    %v131 = vld [vmem:[#allocation5 + $0x108] sm:$0xff]
    %v132 = vld [vmem:[#allocation5 + $0x110] sm:$0xff]
    %v133 = vld [vmem:[#allocation5 + $0x118] sm:$0xff]
    %v134 = vld [vmem:[#allocation5 + $0x120] sm:$0xff]
    %v135 = vld [vmem:[#allocation5 + $0x128] sm:$0xff]
    %v136 = vld [vmem:[#allocation5 + $0x130] sm:$0xff]
    %v137 = vld [vmem:[#allocation5 + $0x138] sm:$0xff]
    %v138 = vld [vmem:[#allocation5 + $0x140] sm:$0xff]
    %v139 = vld [vmem:[#allocation5 + $0x148] sm:$0xff]
    %v140 = vld [vmem:[#allocation5 + $0x150] sm:$0xff]
    %v141 = vld [vmem:[#allocation5 + $0x158] sm:$0xff]
    %v142 = vld [vmem:[#allocation5 + $0x160] sm:$0xff]
    %v143 = vld [vmem:[#allocation5 + $0x168] sm:$0xff]
    %v144 = vld [vmem:[#allocation5 + $0x170] sm:$0xff]
    %v145 = vld [vmem:[#allocation5 + $0x178] sm:$0xff]
    %v146 = vld [vmem:[#allocation5 + $0x180] sm:$0xff]
    %v147 = vld [vmem:[#allocation5 + $0x188] sm:$0xff]
    %v148 = vld [vmem:[#allocation5 + $0x190] sm:$0xff]
    %v149 = vld [vmem:[#allocation5 + $0x198] sm:$0xff]
    %v150 = vld [vmem:[#allocation5 + $0x1a0] sm:$0xff]
    %v151 = vld [vmem:[#allocation5 + $0x1a8] sm:$0xff]
    %v152 = vld [vmem:[#allocation5 + $0x1b0] sm:$0xff]
    %v153 = vld [vmem:[#allocation5 + $0x1b8] sm:$0xff]
    %v154 = vld [vmem:[#allocation5 + $0x1c0] sm:$0xff]
    %v155 = vld [vmem:[#allocation5 + $0x1c8] sm:$0xff]
    %v156 = vld [vmem:[#allocation5 + $0x1d0] sm:$0xff]
    %v157 = vld [vmem:[#allocation5 + $0x1d8] sm:$0xff]
    %v158 = vld [vmem:[#allocation5 + $0x1e0] sm:$0xff]
    %v159 = vld [vmem:[#allocation5 + $0x1e8] sm:$0xff]
    %v160 = vld [vmem:[#allocation5 + $0x1f0] sm:$0xff]
    %v161 = vld [vmem:[#allocation5 + $0x1f8] sm:$0xff]
    %v162 = vld [vmem:[#allocation5 + $0x200] sm:$0xff]
    %v163 = vld [vmem:[#allocation5 + $0x208] sm:$0xff]
    %v164 = vld [vmem:[#allocation5 + $0x210] sm:$0xff]
    %v165 = vld [vmem:[#allocation5 + $0x218] sm:$0xff]
    %v166 = vld [vmem:[#allocation5 + $0x220] sm:$0xff]
    %v167 = vld [vmem:[#allocation5 + $0x228] sm:$0xff]
    %v168 = vld [vmem:[#allocation5 + $0x230] sm:$0xff]
    %v169 = vld [vmem:[#allocation5 + $0x238] sm:$0xff]
    %v170 = vld [vmem:[#allocation5 + $0x240] sm:$0xff]
    %v171 = vld [vmem:[#allocation5 + $0x248] sm:$0xff]
    %v172 = vld [vmem:[#allocation5 + $0x250] sm:$0xff]
    %v173 = vld [vmem:[#allocation5 + $0x258] sm:$0xff]
    %v174 = vld [vmem:[#allocation5 + $0x260] sm:$0xff]
    %v175 = vld [vmem:[#allocation5 + $0x268] sm:$0xff]
    %v176 = vld [vmem:[#allocation5 + $0x270] sm:$0xff]
    %v177 = vld [vmem:[#allocation5 + $0x278] sm:$0xff]
    %v178 = vld [vmem:[#allocation5 + $0x280] sm:$0xff]
    %v179 = vld [vmem:[#allocation5 + $0x288] sm:$0xff]
    %v180 = vld [vmem:[#allocation5 + $0x290] sm:$0xff]
    %v181 = vld [vmem:[#allocation5 + $0x298] sm:$0xff]
    %v182 = vld [vmem:[#allocation5 + $0x2a0] sm:$0xff]
    %v183 = vld [vmem:[#allocation5 + $0x2a8] sm:$0xff]
    %v184 = vld [vmem:[#allocation5 + $0x2b0] sm:$0xff]
    %v185 = vld [vmem:[#allocation5 + $0x2b8] sm:$0xff]
    %v186 = vld [vmem:[#allocation5 + $0x2c0] sm:$0xff]
    %v187 = vld [vmem:[#allocation5 + $0x2c8] sm:$0xff]
    %v188 = vld [vmem:[#allocation5 + $0x2d0] sm:$0xff]
    %v189 = vld [vmem:[#allocation5 + $0x2d8] sm:$0xff]
    %v190 = vld [vmem:[#allocation5 + $0x2e0] sm:$0xff]
    %v191 = vld [vmem:[#allocation5 + $0x2e8] sm:$0xff]
    %v192 = vld [vmem:[#allocation5 + $0x2f0] sm:$0xff]
    %v193 = vld [vmem:[#allocation5 + $0x2f8] sm:$0xff]
    %v194 = vpack.c.bf16 %v99, %v98
    %v195 = vpack.c.bf16 %v101, %v100
    %v196 = vpack.c.bf16 %v103, %v102
    %v197 = vpack.c.bf16 %v105, %v104
    %v198 = vpack.c.bf16 %v107, %v106
    %v199 = vpack.c.bf16 %v109, %v108
    %v200 = vpack.c.bf16 %v111, %v110
    %v201 = vpack.c.bf16 %v113, %v112
    %v202 = vpack.c.bf16 %v115, %v114
    %v203 = vpack.c.bf16 %v117, %v116
    %v204 = vpack.c.bf16 %v119, %v118
    %v205 = vpack.c.bf16 %v121, %v120
    %v206 = vpack.c.bf16 %v123, %v122
    %v207 = vpack.c.bf16 %v125, %v124
    %v208 = vpack.c.bf16 %v127, %v126
    %v209 = vpack.c.bf16 %v129, %v128
    %v210 = vpack.c.bf16 %v131, %v130
    %v211 = vpack.c.bf16 %v133, %v132
    %v212 = vpack.c.bf16 %v135, %v134
    %v213 = vpack.c.bf16 %v137, %v136
    %v214 = vpack.c.bf16 %v139, %v138
    %v215 = vpack.c.bf16 %v141, %v140
    %v216 = vpack.c.bf16 %v143, %v142
    %v217 = vpack.c.bf16 %v145, %v144
    %v218 = vpack.c.bf16 %v147, %v146
    %v219 = vpack.c.bf16 %v149, %v148
    %v220 = vpack.c.bf16 %v151, %v150
    %v221 = vpack.c.bf16 %v153, %v152
    %v222 = vpack.c.bf16 %v155, %v154
    %v223 = vpack.c.bf16 %v157, %v156
    %v224 = vpack.c.bf16 %v159, %v158
    %v225 = vpack.c.bf16 %v161, %v160
    %v226 = vpack.c.bf16 %v163, %v162
    %v227 = vpack.c.bf16 %v165, %v164
    %v228 = vpack.c.bf16 %v167, %v166
    %v229 = vpack.c.bf16 %v169, %v168
    %v230 = vpack.c.bf16 %v171, %v170
    %v231 = vpack.c.bf16 %v173, %v172
    %v232 = vpack.c.bf16 %v175, %v174
    %v233 = vpack.c.bf16 %v177, %v176
    %v234 = vpack.c.bf16 %v179, %v178
    %v235 = vpack.c.bf16 %v181, %v180
    %v236 = vpack.c.bf16 %v183, %v182
    %v237 = vpack.c.bf16 %v185, %v184
    %v238 = vpack.c.bf16 %v187, %v186
    %v239 = vpack.c.bf16 %v189, %v188
    %v240 = vpack.c.bf16 %v191, %v190
    %v241 = vpack.c.bf16 %v193, %v192
    %v242 = vld [vmem:[%s2] sm:$0x1]
    %v244 = vlaneseq
    %v245 = vshrl.u32 %v244, 7
    %v246 = vsub.s32 0, %v245
    %v247 = vrot.slane %v242, %v246
    %v249 = vpack.c.b16 %v92, %v86
    %v250 = vpack.c.b16 %v93, %v87
    %v251 = vpack.c.b16 %v94, %v88
    %v252 = vpack.c.b16 %v95, %v89
    %v253 = vpack.c.b16 %v96, %v90
    %v254 = vpack.c.b16 %v97, %v91
    %261 = vmatprep.subr.bf16.mxu0 0
    %262 = vmatpush1.bf16.msra.mxu0 %v201
    %263 = vmatprep.subr.bf16.mxu0 0
    %264 = vmatpush1.bf16.msra.mxu0 %v200
    %265 = vmatprep.subr.bf16.mxu0 0
    %266 = vmatpush1.bf16.msra.mxu0 %v199
    %267 = vmatprep.subr.bf16.mxu0 0
    %268 = vmatpush1.bf16.msra.mxu0 %v198
    %269 = vmatprep.subr.bf16.mxu0 0
    %270 = vmatpush1.bf16.msra.mxu0 %v197
    %271 = vmatprep.subr.bf16.mxu0 0
    %272 = vmatpush1.bf16.msra.mxu0 %v196
    %273 = vmatprep.subr.bf16.mxu0 0
    %274 = vmatpush1.bf16.msra.mxu0 %v195
    %275 = vmatprep.subr.bf16.mxu0 0
    %276 = vmatpush1.bf16.msra.mxu0 %v194
    %277 = vmatprep.subr.bf16.mxu0 0
    %278 = vmatpush2.bf16.msra.mxu0 %v209
    %279 = vmatprep.subr.bf16.mxu0 0
    %280 = vmatpush2.bf16.msra.mxu0 %v208
    %281 = vmatprep.subr.bf16.mxu0 0
    %282 = vmatpush2.bf16.msra.mxu0 %v207
    %283 = vmatprep.subr.bf16.mxu0 0
    %284 = vmatpush2.bf16.msra.mxu0 %v206
    %285 = vmatprep.subr.bf16.mxu0 0
    %286 = vmatpush2.bf16.msra.mxu0 %v205
    %287 = vmatprep.subr.bf16.mxu0 0
    %288 = vmatpush2.bf16.msra.mxu0 %v204
    %289 = vmatprep.subr.bf16.mxu0 0
    %290 = vmatpush2.bf16.msra.mxu0 %v203
    %291 = vmatprep.subr.bf16.mxu0 0
    %292 = vmatpush2.bf16.msra.mxu0 %v202
    %293 = vmatprep.mubr.bf16.mxu0 %v250
    %294 = vmatmul.mubr.bf16.gmra.mxu0 %v249
    %v295 = vpop.f32.mrf.mxu0
    %v296 = vadd.f32 %v247, %v295
    %v297 = vpop.f32.mrf.mxu0
    %v298 = vpop.f32.mrf.mxu0
    %v299 = vadd.f32 %v247, %v298
    %v300 = vpop.f32.mrf.mxu0
    %301 = vdwg.mxu0
    %302 = vmatprep.subr.bf16.mxu0 0
    %303 = vmatpush1.bf16.msra.mxu0 %v217
    %304 = vmatprep.subr.bf16.mxu0 0
    %305 = vmatpush1.bf16.msra.mxu0 %v216
    %306 = vmatprep.subr.bf16.mxu0 0
    %307 = vmatpush1.bf16.msra.mxu0 %v215
    %308 = vmatprep.subr.bf16.mxu0 0
    %309 = vmatpush1.bf16.msra.mxu0 %v214
    %310 = vmatprep.subr.bf16.mxu0 0
    %311 = vmatpush1.bf16.msra.mxu0 %v213
    %312 = vmatprep.subr.bf16.mxu0 0
    %313 = vmatpush1.bf16.msra.mxu0 %v212
    %314 = vmatprep.subr.bf16.mxu0 0
    %315 = vmatpush1.bf16.msra.mxu0 %v211
    %316 = vmatprep.subr.bf16.mxu0 0
    %317 = vmatpush1.bf16.msra.mxu0 %v210
    %318 = vmatprep.subr.bf16.mxu0 0
    %319 = vmatpush2.bf16.msra.mxu0 %v225
    %320 = vmatprep.subr.bf16.mxu0 0
    %321 = vmatpush2.bf16.msra.mxu0 %v224
    %322 = vmatprep.subr.bf16.mxu0 0
    %323 = vmatpush2.bf16.msra.mxu0 %v223
    %324 = vmatprep.subr.bf16.mxu0 0
    %325 = vmatpush2.bf16.msra.mxu0 %v222
    %326 = vmatprep.subr.bf16.mxu0 0
    %327 = vmatpush2.bf16.msra.mxu0 %v221
    %328 = vmatprep.subr.bf16.mxu0 0
    %329 = vmatpush2.bf16.msra.mxu0 %v220
    %330 = vmatprep.subr.bf16.mxu0 0
    %331 = vmatpush2.bf16.msra.mxu0 %v219
    %332 = vmatprep.subr.bf16.mxu0 0
    %333 = vmatpush2.bf16.msra.mxu0 %v218
    %334 = vmatprep.mubr.bf16.mxu0 %v252
    %335 = vmatmul.mubr.bf16.gmra.mxu0 %v251
    %v336 = vpop.f32.mrf.mxu0
    %v337 = vadd.f32 %v296, %v336
    %v338 = vpop.f32.mrf.mxu0
    %v339 = vpop.f32.mrf.mxu0
    %v340 = vadd.f32 %v299, %v339
    %v341 = vpop.f32.mrf.mxu0
    %342 = vdwg.mxu0
    %343 = vmatprep.subr.bf16.mxu0 0
    %344 = vmatpush1.bf16.msra.mxu0 %v233
    %345 = vmatprep.subr.bf16.mxu0 0
    %346 = vmatpush1.bf16.msra.mxu0 %v232
    %347 = vmatprep.subr.bf16.mxu0 0
    %348 = vmatpush1.bf16.msra.mxu0 %v231
    %349 = vmatprep.subr.bf16.mxu0 0
    %350 = vmatpush1.bf16.msra.mxu0 %v230
    %351 = vmatprep.subr.bf16.mxu0 0
    %352 = vmatpush1.bf16.msra.mxu0 %v229
    %353 = vmatprep.subr.bf16.mxu0 0
    %354 = vmatpush1.bf16.msra.mxu0 %v228
    %355 = vmatprep.subr.bf16.mxu0 0
    %356 = vmatpush1.bf16.msra.mxu0 %v227
    %357 = vmatprep.subr.bf16.mxu0 0
    %358 = vmatpush1.bf16.msra.mxu0 %v226
    %359 = vmatprep.subr.bf16.mxu0 0
    %360 = vmatpush2.bf16.msra.mxu0 %v241
    %361 = vmatprep.subr.bf16.mxu0 0
    %362 = vmatpush2.bf16.msra.mxu0 %v240
    %363 = vmatprep.subr.bf16.mxu0 0
    %364 = vmatpush2.bf16.msra.mxu0 %v239
    %365 = vmatprep.subr.bf16.mxu0 0
    %366 = vmatpush2.bf16.msra.mxu0 %v238
    %367 = vmatprep.subr.bf16.mxu0 0
    %368 = vmatpush2.bf16.msra.mxu0 %v237
    %369 = vmatprep.subr.bf16.mxu0 0
    %370 = vmatpush2.bf16.msra.mxu0 %v236
    %371 = vmatprep.subr.bf16.mxu0 0
    %372 = vmatpush2.bf16.msra.mxu0 %v235
    %373 = vmatprep.subr.bf16.mxu0 0
    %374 = vmatpush2.bf16.msra.mxu0 %v234
    %375 = vmatprep.mubr.bf16.mxu0 %v254
    %376 = vmatmul.mubr.bf16.gmra.mxu0 %v253
    %v377 = vpop.f32.mrf.mxu0
    %v378 = vadd.f32 %v337, %v377
    %v379 = vpop.f32.mrf.mxu0
    %v380 = vpop.f32.mrf.mxu0
    %v381 = vadd.f32 %v340, %v380
    %v382 = vpop.f32.mrf.mxu0
    %383 = vdwg.mxu0
    %v384 = vmax.f32 %v378, 0.0
    %v385 = vmax.f32 %v381, 0.0
    %v386 = vrot.slane %v384, 4
    %v387 = vadd.f32 %v384, %v386
    %v388 = vrot.slane %v387, 2
    %v389 = vadd.f32 %v387, %v388
    %v390 = vrot.slane %v389, 1
    %v391 = vadd.f32 %v389, %v390
    %v392 = vrot.slane %v385, 4
    %v393 = vadd.f32 %v385, %v392
    %v394 = vrot.slane %v393, 2
    %v395 = vadd.f32 %v393, %v394
    %v396 = vrot.slane %v395, 1
    %v397 = vadd.f32 %v395, %v396
    %v398 = vmul.f32 %v391, 0.125
    %v399 = vmul.f32 %v397, 0.125
    %v400 = vld [vmem:[%s3] sm:$0x1]
    %v402 = vlaneseq
    %v403 = vshrl.u32 %v402, 7
    %v404 = vsub.s32 0, %v403
    %v405 = vrot.slane %v400, %v404
    %v407 = vmul.f32 %v398, %v405
    %v408 = vmul.f32 %v399, %v405
    %v411 = vrot.slane %v408, 7
    %vm412 = vcmask 1041409
    %v413 = vsel %vm412, %v411, %v407
    %vm415 = vcmask 1041408
    %v416 = vsel %vm415, %v413, 0.0
    %417 = vadd.xlane.f32.xlu0 %v416
    %v418 = vpop.xlane.xlu0 %417
    %s419 = sld [smem:[#allocation2]]
    %v420 = vstv %s419
    %v421 = vadd.f32 %v418, %v420
    %vm422 = vcmask 1024
    %423 = vst.msk [vmem:[%s5] sm:$0x3] %vm422, %v421
    // Predicated region
    $region30: #{tpu_custom_call.1} parent=1 // pred_check
      _
    $region31: #{tpu_custom_call.1} parent=1 // pred_check_branch
      %425 = sbr.rel (0) target = $region33
    $region32: #{tpu_custom_call.1} parent=1 // pred_region
      _
    $region33: #{tpu_custom_call.1} parent=1 // pred_fallthru
      _
    // Predicated region
    $region34: #{tpu_custom_call.1} parent=1 // pred_check
      _
    $region35: #{tpu_custom_call.1} parent=1 // pred_check_branch
      %427 = sbr.rel (0) target = $region37
    $region36: #{tpu_custom_call.1} parent=1 // pred_region
      _
    $region37: #{tpu_custom_call.1} parent=1 // pred_fallthru
      _
    %428 = vsyncpa [#allocation4], 1
    %429 = vsyncpa [#allocation6], 1

</llo_original>
